<compile_context>
chip_gen: v5e
topology: v5e:2x2
jax: 0.10.0
libtpu: 0.0.40
codegen_flags: <defaults>
</compile_context>

<pallas_src>
import functools

import jax
import jax.numpy as jnp
from jax.experimental import pallas as pl
from jax.experimental.pallas import tpu as pltpu


def _spa_atten_kernel(x_ref, w_ref, b_ref, p_ref, qk_ref, *,
                      half_rows, rest_rows, approx_recip):
    # x_ref block: (B, C*T, V); rows [:half_rows] are x[:, :C//2],
    # rows [half_rows:] are x[:, C//2:].
    B = x_ref.shape[0]

    # AdaptiveAvgPool2d(1) over (C/2, T) per joint v -> sublane-slice reductions.
    q = jnp.sum(x_ref[:, :half_rows, :], axis=1) * (1.0 / float(half_rows))  # (B, V)
    k = jnp.sum(x_ref[:, half_rows:, :], axis=1) * (1.0 / float(rest_rows))  # (B, V)

    # Put the batch on the lane axis: (2B, V) -> (V, 2B).  One small XLU
    # transpose; everything downstream (linear, outer product, softmax, stores)
    # then runs lane-dense instead of at 17/128 lane utilisation.
    qk_t = jnp.transpose(jnp.concatenate([q, k], axis=0))                    # (V, 2B)

    # Raw pooled Q_o / K_o, packed lane-dense: (2, V, B).
    qk_ref[...] = jnp.stack([qk_t[:, :B], qk_t[:, B:]], axis=0)

    # Fused relu(Linear(.)): torch y = x @ W^T + b  <=>  y^T = W @ x^T + b.
    # One (V, V) @ (V, 2B) MXU call with the batch on lanes.
    y = jnp.dot(w_ref[...], qk_t, preferred_element_type=jnp.float32) + b_ref[...]
    y = jnp.maximum(y, 0.0)                                                   # (V, 2B)
    qt = y[:, :B]                                                             # (V, B)
    kt = y[:, B:]                                                             # (V, B)

    # softmax over w of s[v, w, n] = qt[v, n] * kt[w, n].
    # qt, kt >= 0 post-ReLU, so max_w s = qt_v * max_w(kt_w): subtract the max
    # on the small (V, B) tensor instead of over the (V, V, B) cube.
    kmax = jnp.max(kt, axis=0, keepdims=True)                                 # (1, B)
    e = jnp.exp(qt[:, None, :] * (kt - kmax)[None, :, :])                     # (V, V, B)
    denom = jnp.sum(e, axis=1, keepdims=True)                                 # (V, 1, B)
    if approx_recip:
        p_ref[...] = e * pl.reciprocal(denom, approx=True)   # EUP slot, ~free
    else:
        p_ref[...] = e / denom


def spa_atten_forward(x, w, b, out_channels, b_tile=None, approx_recip=True):
    """x: (N, C, T, V) f32; w: (V, V) torch-Linear weight (out, in); b: (V,)."""
    x = jnp.asarray(x, jnp.float32)
    N, C, T, V = x.shape
    half = C // 2
    half_rows = half * T
    rest_rows = (C - half) * T

    # Batch tile selection:
    #  * b_tile <= 128 keeps the double-buffered, lane/sublane-padded footprint
    #    ~10-14 MiB (see accounting in header) on every TPU generation.
    #  * For N > 128 we force b_tile = 128 so the lane dim of the output blocks
    #    is a multiple of 128 (unmasked full-width stores + (8,128) block rule)
    #    and the grid has >= 2 steps for v7x's two TensorCores.
    if b_tile is None:
        b_tile = N if N <= 128 else 128
    if N > b_tile and b_tile % 128 != 0:
        raise ValueError("b_tile must be a multiple of 128 when it does not cover N")

    n_blocks = -(-N // b_tile)
    N_pad = n_blocks * b_tile

    x_flat = x.reshape(N, C * T, V)          # contiguous reshape, no relayout
    if N_pad != N:
        x_flat = jnp.pad(x_flat, ((0, N_pad - N), (0, 0), (0, 0)))

    w_arr = jnp.asarray(w, jnp.float32)                  # (V, V), torch (out, in)
    b_col = jnp.asarray(b, jnp.float32).reshape(V, 1)    # broadcast along lanes

    kernel = functools.partial(
        _spa_atten_kernel, half_rows=half_rows, rest_rows=rest_rows,
        approx_recip=approx_recip,
    )

    p_vvn, qk_out = pl.pallas_call(
        kernel,
        out_shape=(
            jax.ShapeDtypeStruct((V, V, N_pad), jnp.float32),
            jax.ShapeDtypeStruct((2, V, N_pad), jnp.float32),
        ),
        grid=(n_blocks,),
        in_specs=[
            pl.BlockSpec((b_tile, C * T, V), lambda n: (n, 0, 0)),
            pl.BlockSpec((V, V), lambda n: (0, 0)),
            pl.BlockSpec((V, 1), lambda n: (0, 0)),
        ],
        out_specs=(
            pl.BlockSpec((V, V, b_tile), lambda n: (0, 0, n)),
            pl.BlockSpec((2, V, b_tile), lambda n: (0, 0, n)),
        ),
        compiler_params=pltpu.CompilerParams(
            dimension_semantics=("parallel",),
            # Explicit limit: real padded footprint at b_tile=128 is ~10-14 MiB,
            # so 32 MiB gives headroom and is safe on v5e/v6e/v7x alike.
            vmem_limit_bytes=32 * 1024 * 1024,
        ),
    )(x_flat, w_arr, b_col)

    # Back to PyTorch layouts.  The out_channels repeat of identical tiles is
    # kept as a broadcast (never materialized inside the kernel).
    p = jnp.transpose(p_vvn[:, :, :N], (2, 0, 1))                    # (N, V, V)
    att = jnp.broadcast_to(p[:, None, :, :], (N, out_channels, V, V))
    Q_o = jnp.transpose(qk_out[0, :, :N]).reshape(N, V, 1, 1)
    K_o = jnp.transpose(qk_out[1, :, :N]).reshape(N, V, 1, 1)
    return att, Q_o, K_o


def spa_atten_ref(x, w, b, out_channels):
    """Pure-JAX reference mirroring the PyTorch forward."""
    N, C, T, V = x.shape
    x1 = x[:, : C // 2]
    x2 = x[:, C // 2:]
    q = jnp.mean(jnp.transpose(x1, (0, 3, 1, 2)), axis=(2, 3))   # (N, V)
    k = jnp.mean(jnp.transpose(x2, (0, 3, 1, 2)), axis=(2, 3))   # (N, V)
    qt = jax.nn.relu(q @ w.T + b)
    kt = jax.nn.relu(k @ w.T + b)
    s = jnp.einsum('nv,nw->nvw', qt, kt)
    p = jax.nn.softmax(s, axis=-1)
    att = jnp.broadcast_to(p[:, None], (N, out_channels, V, V))
    return att, q.reshape(N, V, 1, 1), k.reshape(N, V, 1, 1)


if __name__ == "__main__":
    # Small shapes consistent with the module; V = 17 is required by Linear(17, 17).
    N, C, T, V = 8, 4, 16, 17
    out_channels = 4

    key = jax.random.PRNGKey(0)
    kx, kw, kb, kx2 = jax.random.split(key, 4)
    x = jax.random.normal(kx, (N, C, T, V), dtype=jnp.float32)

    # Deterministic Linear(17, 17) params (PyTorch default: U(-1/sqrt(in), 1/sqrt(in))).
    bound = 1.0 / (V ** 0.5)
    w = jax.random.uniform(kw, (V, V), minval=-bound, maxval=bound, dtype=jnp.float32)
    b = jax.random.uniform(kb, (V,), minval=-bound, maxval=bound, dtype=jnp.float32)

    # Test 1: single-block grid, exact softmax divide -> tight tolerance.
    att, Q_o, K_o = spa_atten_forward(x, w, b, out_channels, approx_recip=False)
    jax.block_until_ready((att, Q_o, K_o))
    att_r, Q_r, K_r = spa_atten_ref(x, w, b, out_channels)
    assert att.shape == (N, out_channels, V, V)
    assert jnp.allclose(att, att_r, atol=1e-5, rtol=1e-5), "Spa_atten mismatch"
    assert jnp.allclose(Q_o, Q_r, atol=1e-5, rtol=1e-5), "Q_o mismatch"
    assert jnp.allclose(K_o, K_r, atol=1e-5, rtol=1e-5), "K_o mismatch"

    # Test 2: production config (approx reciprocal), multi-block grid + batch
    # padding (N=300 -> 3 blocks of 128, padded to 384).
    N2 = 300
    x2 = jax.random.normal(kx2, (N2, C, T, V), dtype=jnp.float32)
    att2, Q2, K2 = spa_atten_forward(x2, w, b, out_channels)  # approx_recip=True
    jax.block_until_ready((att2, Q2, K2))
    att2_r, Q2_r, K2_r = spa_atten_ref(x2, w, b, out_channels)
    assert jnp.allclose(att2, att2_r, atol=5e-3, rtol=5e-3), "Spa_atten mismatch (multi-block)"
    assert jnp.allclose(Q2, Q2_r, atol=1e-5, rtol=1e-5), "Q_o mismatch (multi-block)"
    assert jnp.allclose(K2, K2_r, atol=1e-5, rtol=1e-5), "K_o mismatch (multi-block)"

    print("KERNEL_OK")
</pallas_src>

<mosaic_0001>
module attributes {stable_mosaic.version = 11 : i64} {
  func.func @_spa_atten_kernel(%arg0: i32, %arg1: memref<8x64x17xf32, #tpu.memory_space<vmem>>, %arg2: memref<17x17xf32, #tpu.memory_space<vmem>>, %arg3: memref<17x1xf32, #tpu.memory_space<vmem>>, %arg4: memref<17x17x8xf32, #tpu.memory_space<vmem>>, %arg5: memref<2x17x8xf32, #tpu.memory_space<vmem>>) attributes {dimension_semantics = [#tpu.dimension_semantics<parallel>], iteration_bounds = array<i64: 1>, scalar_prefetch = 0 : i64, scratch_operands = 0 : i64, tpu.core_type = #tpu.core_type<tc>, window_params = [{transform_indices = @transform_0, window_bounds = array<i64: 8, 64, 17>}, {pipeline_mode = #tpu.pipeline_mode<synchronous>, transform_indices = @transform_1, window_bounds = array<i64: 17, 17>}, {pipeline_mode = #tpu.pipeline_mode<synchronous>, transform_indices = @transform_2, window_bounds = array<i64: 17, 1>}, {transform_indices = @transform_3, window_bounds = array<i64: 17, 17, 8>}, {transform_indices = @transform_4, window_bounds = array<i64: 2, 17, 8>}]} {
    %c0 = arith.constant 0 : index
    %c0_0 = arith.constant 0 : index
    %c0_1 = arith.constant 0 : index
    %0 = vector.load %arg1[%c0, %c0_0, %c0_1] : memref<8x64x17xf32, #tpu.memory_space<vmem>>, vector<8x32x17xf32>
    %cst = arith.constant dense<0.000000e+00> : vector<8x17xf32>
    %1 = vector.multi_reduction <add>, %0, %cst [1] : vector<8x32x17xf32> to vector<8x17xf32>
    %cst_2 = arith.constant 3.125000e-02 : f32
    %2 = vector.broadcast %cst_2 : f32 to vector<8x17xf32>
    %3 = arith.mulf %1, %2 : vector<8x17xf32>
    %c0_3 = arith.constant 0 : index
    %c32 = arith.constant 32 : index
    %c0_4 = arith.constant 0 : index
    %4 = vector.load %arg1[%c0_3, %c32, %c0_4] : memref<8x64x17xf32, #tpu.memory_space<vmem>>, vector<8x32x17xf32>
    %cst_5 = arith.constant dense<0.000000e+00> : vector<8x17xf32>
    %5 = vector.multi_reduction <add>, %4, %cst_5 [1] : vector<8x32x17xf32> to vector<8x17xf32>
    %cst_6 = arith.constant 3.125000e-02 : f32
    %6 = vector.broadcast %cst_6 : f32 to vector<8x17xf32>
    %7 = arith.mulf %5, %6 : vector<8x17xf32>
    %8 = tpu.concatenate %3, %7 in 0 : vector<8x17xf32>, vector<8x17xf32> -> vector<16x17xf32>
    %9 = tpu.transpose %8, [1, 0] : vector<16x17xf32> -> vector<17x16xf32>
    %10 = vector.extract_strided_slice %9 {offsets = [0, 0], sizes = [17, 8], strides = [1, 1]} : vector<17x16xf32> to vector<17x8xf32>
    %11 = vector.extract_strided_slice %9 {offsets = [0, 8], sizes = [17, 8], strides = [1, 1]} : vector<17x16xf32> to vector<17x8xf32>
    %12 = vector.shape_cast %10 : vector<17x8xf32> to vector<1x17x8xf32>
    %13 = vector.shape_cast %11 : vector<17x8xf32> to vector<1x17x8xf32>
    %14 = tpu.concatenate %12, %13 in 0 : vector<1x17x8xf32>, vector<1x17x8xf32> -> vector<2x17x8xf32>
    %c0_7 = arith.constant 0 : index
    %c0_8 = arith.constant 0 : index
    %c0_9 = arith.constant 0 : index
    %15 = vector.load %arg5[%c0_7, %c0_8, %c0_9] : memref<2x17x8xf32, #tpu.memory_space<vmem>>, vector<2x17x8xf32>
    tpu.vector_store %arg5[%c0_7, %c0_8, %c0_9], %14 {strides = array<i32>} : memref<2x17x8xf32, #tpu.memory_space<vmem>>, vector<2x17x8xf32>,
    %c0_10 = arith.constant 0 : index
    %c0_11 = arith.constant 0 : index
    %16 = vector.load %arg2[%c0_10, %c0_11] : memref<17x17xf32, #tpu.memory_space<vmem>>, vector<17x17xf32>
    %cst_12 = arith.constant dense<0.000000e+00> : vector<17x16xf32>
    %17 = tpu.matmul %16, %9, %cst_12 {dimension_numbers = #tpu.dot_dimension_numbers<[1], [0], [0], [1], [0, 0, 1, 1], [], []>} : vector<17x17xf32>, vector<17x16xf32>, vector<17x16xf32> -> vector<17x16xf32>
    %c0_13 = arith.constant 0 : index
    %c0_14 = arith.constant 0 : index
    %18 = vector.load %arg3[%c0_13, %c0_14] : memref<17x1xf32, #tpu.memory_space<vmem>>, vector<17x1xf32>
    %19 = vector.broadcast %18 : vector<17x1xf32> to vector<17x16xf32>
    %20 = arith.addf %17, %19 : vector<17x16xf32>
    %cst_15 = arith.constant 0.000000e+00 : f32
    %21 = vector.broadcast %cst_15 : f32 to vector<17x16xf32>
    %22 = arith.maximumf %20, %21 : vector<17x16xf32>
    %23 = vector.extract_strided_slice %22 {offsets = [0, 0], sizes = [17, 8], strides = [1, 1]} : vector<17x16xf32> to vector<17x8xf32>
    %24 = vector.extract_strided_slice %22 {offsets = [0, 8], sizes = [17, 8], strides = [1, 1]} : vector<17x16xf32> to vector<17x8xf32>
    %cst_16 = arith.constant dense<0xFF800000> : vector<8xf32>
    %25 = vector.multi_reduction <maximumf>, %24, %cst_16 [0] : vector<17x8xf32> to vector<8xf32>
    %26 = vector.shape_cast %25 : vector<8xf32> to vector<1x8xf32>
    %27 = vector.shape_cast %23 : vector<17x8xf32> to vector<17x1x8xf32>
    %28 = vector.broadcast %26 : vector<1x8xf32> to vector<17x8xf32>
    %29 = arith.subf %24, %28 : vector<17x8xf32>
    %30 = vector.shape_cast %29 : vector<17x8xf32> to vector<1x17x8xf32>
    %31 = vector.broadcast %27 : vector<17x1x8xf32> to vector<17x17x8xf32>
    %32 = vector.broadcast %30 : vector<1x17x8xf32> to vector<17x17x8xf32>
    %33 = arith.mulf %31, %32 : vector<17x17x8xf32>
    %34 = math.exp %33 : vector<17x17x8xf32>
    %cst_17 = arith.constant dense<0.000000e+00> : vector<17x8xf32>
    %35 = vector.multi_reduction <add>, %34, %cst_17 [1] : vector<17x17x8xf32> to vector<17x8xf32>
    %36 = vector.shape_cast %35 : vector<17x8xf32> to vector<17x1x8xf32>
    %37 = vector.broadcast %36 : vector<17x1x8xf32> to vector<17x17x8xf32>
    %38 = arith.divf %34, %37 : vector<17x17x8xf32>
    %c0_18 = arith.constant 0 : index
    %c0_19 = arith.constant 0 : index
    %c0_20 = arith.constant 0 : index
    %39 = vector.load %arg4[%c0_18, %c0_19, %c0_20] : memref<17x17x8xf32, #tpu.memory_space<vmem>>, vector<17x17x8xf32>
    tpu.vector_store %arg4[%c0_18, %c0_19, %c0_20], %38 {strides = array<i32>} : memref<17x17x8xf32, #tpu.memory_space<vmem>>, vector<17x17x8xf32>,
    return
  }
  func.func @transform_0(%arg0: i32) -> (i32, i32, i32) {
    %c0_i32 = arith.constant 0 : i32
    %c0_i32_0 = arith.constant 0 : i32
    %c0_i32_1 = arith.constant 0 : i32
    return %arg0, %c0_i32, %c0_i32_0 : i32, i32, i32
  }
  func.func @transform_1(%arg0: i32) -> (i32, i32) {
    %c0_i32 = arith.constant 0 : i32
    %c0_i32_0 = arith.constant 0 : i32
    %c0_i32_1 = arith.constant 0 : i32
    return %c0_i32, %c0_i32_0 : i32, i32
  }
  func.func @transform_2(%arg0: i32) -> (i32, i32) {
    %c0_i32 = arith.constant 0 : i32
    %c0_i32_0 = arith.constant 0 : i32
    %c0_i32_1 = arith.constant 0 : i32
    return %c0_i32, %c0_i32_0 : i32, i32
  }
  func.func @transform_3(%arg0: i32) -> (i32, i32, i32) {
    %c0_i32 = arith.constant 0 : i32
    %c0_i32_0 = arith.constant 0 : i32
    %c0_i32_1 = arith.constant 0 : i32
    return %c0_i32, %c0_i32_0, %arg0 : i32, i32, i32
  }
  func.func @transform_4(%arg0: i32) -> (i32, i32, i32) {
    %c0_i32 = arith.constant 0 : i32
    %c0_i32_0 = arith.constant 0 : i32
    %c0_i32_1 = arith.constant 0 : i32
    return %c0_i32, %c0_i32_0, %arg0 : i32, i32, i32
  }
}

</mosaic_0001>

<llo_original>
// kernel: tpu_custom_call.1
$region0: #{tpu_custom_call.1}
  #allocation0 [shape = 'u32[]', space=smem, size = 0x4, offset = 0x4, fixed_abs, tag = 'smem constant byte address 0x4 - core index']
  #allocation1 [shape = 'u32[72,128]{1,0:T(1,128)}', space=vmem, size = 0x9000, scoped, tag = 'internal scratch']
  %s0 = inlined_call_operand.vmem [shape: f32[8,64,17], index: 0, kind: input, shape index: {}]
  %s1 = inlined_call_operand.vmem [shape: f32[17,17], index: 1, kind: input, shape index: {}]
  %s2 = inlined_call_operand.vmem [shape: f32[17,1], index: 2, kind: input, shape index: {}]
  %s3 = inlined_call_operand.vmem [shape: f32[17,17,8], index: 3, kind: output, shape index: {0}]
  %s4 = inlined_call_operand.vmem [shape: f32[2,17,8], index: 4, kind: output, shape index: {1}]
  %5 = xla_tuple %s3, %s4
  %s6 = sld [smem:[#allocation0]]
  $region30: #{tpu_custom_call.1} parent=0
    _
  %s8 = ssub.s32 1, %s6
  %s9 = scalar_select 0, %s8, %s6
  // Predicated region
  $region2: #{tpu_custom_call.1} parent=0 // pred_check
    _
  $region3: #{tpu_custom_call.1} parent=0 // pred_check_branch
    %11 = sbr.rel (0) target = $region5
  $region4: #{tpu_custom_call.1} parent=0 // pred_region
    _
  $region5: #{tpu_custom_call.1} parent=0 // pred_fallthru
    _
  // Predicated region
  $region6: #{tpu_custom_call.1} parent=0 // pred_check
    _
  $region7: #{tpu_custom_call.1} parent=0 // pred_check_branch
    %13 = sbr.rel (0) target = $region9
  $region8: #{tpu_custom_call.1} parent=0 // pred_region
    _
  $region9: #{tpu_custom_call.1} parent=0 // pred_fallthru
    _
  // Predicated region
  $region10: #{tpu_custom_call.1} parent=0 // pred_check
    _
  $region11: #{tpu_custom_call.1} parent=0 // pred_check_branch
    %15 = sbr.rel (0) target = $region13
  $region12: #{tpu_custom_call.1} parent=0 // pred_region
    _
  $region13: #{tpu_custom_call.1} parent=0 // pred_fallthru
    _
  %v16 = vld [vmem:[%s0] sm:$0xff]
  %v17 = vld [vmem:[%s0 + $0x8] sm:$0xff]
  %v18 = vld [vmem:[%s0 + $0x10] sm:$0xff]
  %v19 = vld [vmem:[%s0 + $0x18] sm:$0xff]
  %v20 = vld [vmem:[%s0 + $0x40] sm:$0xff]
  %v21 = vld [vmem:[%s0 + $0x48] sm:$0xff]
  %v22 = vld [vmem:[%s0 + $0x50] sm:$0xff]
  %v23 = vld [vmem:[%s0 + $0x58] sm:$0xff]
  %v24 = vld [vmem:[%s0 + $0x80] sm:$0xff]
  %v25 = vld [vmem:[%s0 + $0x88] sm:$0xff]
  %v26 = vld [vmem:[%s0 + $0x90] sm:$0xff]
  %v27 = vld [vmem:[%s0 + $0x98] sm:$0xff]
  %v28 = vld [vmem:[%s0 + $0xc0] sm:$0xff]
  %v29 = vld [vmem:[%s0 + $0xc8] sm:$0xff]
  %v30 = vld [vmem:[%s0 + $0xd0] sm:$0xff]
  %v31 = vld [vmem:[%s0 + $0xd8] sm:$0xff]
  %v32 = vld [vmem:[%s0 + $0x100] sm:$0xff]
  %v33 = vld [vmem:[%s0 + $0x108] sm:$0xff]
  %v34 = vld [vmem:[%s0 + $0x110] sm:$0xff]
  %v35 = vld [vmem:[%s0 + $0x118] sm:$0xff]
  %v36 = vld [vmem:[%s0 + $0x140] sm:$0xff]
  %v37 = vld [vmem:[%s0 + $0x148] sm:$0xff]
  %v38 = vld [vmem:[%s0 + $0x150] sm:$0xff]
  %v39 = vld [vmem:[%s0 + $0x158] sm:$0xff]
  %v40 = vld [vmem:[%s0 + $0x180] sm:$0xff]
  %v41 = vld [vmem:[%s0 + $0x188] sm:$0xff]
  %v42 = vld [vmem:[%s0 + $0x190] sm:$0xff]
  %v43 = vld [vmem:[%s0 + $0x198] sm:$0xff]
  %v44 = vld [vmem:[%s0 + $0x1c0] sm:$0xff]
  %v45 = vld [vmem:[%s0 + $0x1c8] sm:$0xff]
  %v46 = vld [vmem:[%s0 + $0x1d0] sm:$0xff]
  %v47 = vld [vmem:[%s0 + $0x1d8] sm:$0xff]
  %vm48 = vcmask 138240
  %v49 = vsel %vm48, %v16, 0.0
  %v50 = vsel %vm48, %v17, 0.0
  %v51 = vadd.f32 %v49, %v50
  %v52 = vsel %vm48, %v18, 0.0
  %v53 = vadd.f32 %v51, %v52
  %v54 = vsel %vm48, %v19, 0.0
  %v55 = vadd.f32 %v53, %v54
  %v56 = vrot.slane %v55, 4
  %v57 = vadd.f32 %v55, %v56
  %v58 = vrot.slane %v57, 2
  %v59 = vadd.f32 %v57, %v58
  %v60 = vrot.slane %v59, 1
  %v61 = vadd.f32 %v59, %v60
  %v62 = vsel %vm48, %v20, 0.0
  %v63 = vsel %vm48, %v21, 0.0
  %v64 = vadd.f32 %v62, %v63
  %v65 = vsel %vm48, %v22, 0.0
  %v66 = vadd.f32 %v64, %v65
  %v67 = vsel %vm48, %v23, 0.0
  %v68 = vadd.f32 %v66, %v67
  %v69 = vrot.slane %v68, 4
  %v70 = vadd.f32 %v68, %v69
  %v71 = vrot.slane %v70, 2
  %v72 = vadd.f32 %v70, %v71
  %v73 = vrot.slane %v72, 1
  %v74 = vadd.f32 %v72, %v73
  %v75 = vsel %vm48, %v24, 0.0
  %v76 = vsel %vm48, %v25, 0.0
  %v77 = vadd.f32 %v75, %v76
  %v78 = vsel %vm48, %v26, 0.0
  %v79 = vadd.f32 %v77, %v78
  %v80 = vsel %vm48, %v27, 0.0
  %v81 = vadd.f32 %v79, %v80
  %v82 = vrot.slane %v81, 4
  %v83 = vadd.f32 %v81, %v82
  %v84 = vrot.slane %v83, 2
  %v85 = vadd.f32 %v83, %v84
  %v86 = vrot.slane %v85, 1
  %v87 = vadd.f32 %v85, %v86
  %v88 = vsel %vm48, %v28, 0.0
  %v89 = vsel %vm48, %v29, 0.0
  %v90 = vadd.f32 %v88, %v89
  %v91 = vsel %vm48, %v30, 0.0
  %v92 = vadd.f32 %v90, %v91
  %v93 = vsel %vm48, %v31, 0.0
  %v94 = vadd.f32 %v92, %v93
  %v95 = vrot.slane %v94, 4
  %v96 = vadd.f32 %v94, %v95
  %v97 = vrot.slane %v96, 2
  %v98 = vadd.f32 %v96, %v97
  %v99 = vrot.slane %v98, 1
  %v100 = vadd.f32 %v98, %v99
  %v101 = vsel %vm48, %v32, 0.0
  %v102 = vsel %vm48, %v33, 0.0
  %v103 = vadd.f32 %v101, %v102
  %v104 = vsel %vm48, %v34, 0.0
  %v105 = vadd.f32 %v103, %v104
  %v106 = vsel %vm48, %v35, 0.0
  %v107 = vadd.f32 %v105, %v106
  %v108 = vrot.slane %v107, 4
  %v109 = vadd.f32 %v107, %v108
  %v110 = vrot.slane %v109, 2
  %v111 = vadd.f32 %v109, %v110
  %v112 = vrot.slane %v111, 1
  %v113 = vadd.f32 %v111, %v112
  %v114 = vsel %vm48, %v36, 0.0
  %v115 = vsel %vm48, %v37, 0.0
  %v116 = vadd.f32 %v114, %v115
  %v117 = vsel %vm48, %v38, 0.0
  %v118 = vadd.f32 %v116, %v117
  %v119 = vsel %vm48, %v39, 0.0
  %v120 = vadd.f32 %v118, %v119
  %v121 = vrot.slane %v120, 4
  %v122 = vadd.f32 %v120, %v121
  %v123 = vrot.slane %v122, 2
  %v124 = vadd.f32 %v122, %v123
  %v125 = vrot.slane %v124, 1
  %v126 = vadd.f32 %v124, %v125
  %v127 = vsel %vm48, %v40, 0.0
  %v128 = vsel %vm48, %v41, 0.0
  %v129 = vadd.f32 %v127, %v128
  %v130 = vsel %vm48, %v42, 0.0
  %v131 = vadd.f32 %v129, %v130
  %v132 = vsel %vm48, %v43, 0.0
  %v133 = vadd.f32 %v131, %v132
  %v134 = vrot.slane %v133, 4
  %v135 = vadd.f32 %v133, %v134
  %v136 = vrot.slane %v135, 2
  %v137 = vadd.f32 %v135, %v136
  %v138 = vrot.slane %v137, 1
  %v139 = vadd.f32 %v137, %v138
  %v140 = vsel %vm48, %v44, 0.0
  %v141 = vsel %vm48, %v45, 0.0
  %v142 = vadd.f32 %v140, %v141
  %v143 = vsel %vm48, %v46, 0.0
  %v144 = vadd.f32 %v142, %v143
  %v145 = vsel %vm48, %v47, 0.0
  %v146 = vadd.f32 %v144, %v145
  %v147 = vrot.slane %v146, 4
  %v148 = vadd.f32 %v146, %v147
  %v149 = vrot.slane %v148, 2
  %v150 = vadd.f32 %v148, %v149
  %v151 = vrot.slane %v150, 1
  %v152 = vadd.f32 %v150, %v151
  %v153 = vmul.f32 %v61, 0.03125
  %v154 = vmul.f32 %v74, 0.03125
  %v155 = vmul.f32 %v87, 0.03125
  %v156 = vmul.f32 %v100, 0.03125
  %v157 = vmul.f32 %v113, 0.03125
  %v158 = vmul.f32 %v126, 0.03125
  %v159 = vmul.f32 %v139, 0.03125
  %v160 = vmul.f32 %v152, 0.03125
  %v161 = vld [vmem:[%s0 + $0x20] sm:$0xff]
  %v162 = vld [vmem:[%s0 + $0x28] sm:$0xff]
  %v163 = vld [vmem:[%s0 + $0x30] sm:$0xff]
  %v164 = vld [vmem:[%s0 + $0x38] sm:$0xff]
  %v165 = vld [vmem:[%s0 + $0x60] sm:$0xff]
  %v166 = vld [vmem:[%s0 + $0x68] sm:$0xff]
  %v167 = vld [vmem:[%s0 + $0x70] sm:$0xff]
  %v168 = vld [vmem:[%s0 + $0x78] sm:$0xff]
  %v169 = vld [vmem:[%s0 + $0xa0] sm:$0xff]
  %v170 = vld [vmem:[%s0 + $0xa8] sm:$0xff]
  %v171 = vld [vmem:[%s0 + $0xb0] sm:$0xff]
  %v172 = vld [vmem:[%s0 + $0xb8] sm:$0xff]
  %v173 = vld [vmem:[%s0 + $0xe0] sm:$0xff]
  %v174 = vld [vmem:[%s0 + $0xe8] sm:$0xff]
  %v175 = vld [vmem:[%s0 + $0xf0] sm:$0xff]
  %v176 = vld [vmem:[%s0 + $0xf8] sm:$0xff]
  %v177 = vld [vmem:[%s0 + $0x120] sm:$0xff]
  %v178 = vld [vmem:[%s0 + $0x128] sm:$0xff]
  %v179 = vld [vmem:[%s0 + $0x130] sm:$0xff]
  %v180 = vld [vmem:[%s0 + $0x138] sm:$0xff]
  %v181 = vld [vmem:[%s0 + $0x160] sm:$0xff]
  %v182 = vld [vmem:[%s0 + $0x168] sm:$0xff]
  %v183 = vld [vmem:[%s0 + $0x170] sm:$0xff]
  %v184 = vld [vmem:[%s0 + $0x178] sm:$0xff]
  %v185 = vld [vmem:[%s0 + $0x1a0] sm:$0xff]
  %v186 = vld [vmem:[%s0 + $0x1a8] sm:$0xff]
  %v187 = vld [vmem:[%s0 + $0x1b0] sm:$0xff]
  %v188 = vld [vmem:[%s0 + $0x1b8] sm:$0xff]
  %v189 = vld [vmem:[%s0 + $0x1e0] sm:$0xff]
  %v190 = vld [vmem:[%s0 + $0x1e8] sm:$0xff]
  %v191 = vld [vmem:[%s0 + $0x1f0] sm:$0xff]
  %v192 = vld [vmem:[%s0 + $0x1f8] sm:$0xff]
  %v193 = vsel %vm48, %v161, 0.0
  %v194 = vsel %vm48, %v162, 0.0
  %v195 = vadd.f32 %v193, %v194
  %v196 = vsel %vm48, %v163, 0.0
  %v197 = vadd.f32 %v195, %v196
  %v198 = vsel %vm48, %v164, 0.0
  %v199 = vadd.f32 %v197, %v198
  %v200 = vrot.slane %v199, 4
  %v201 = vadd.f32 %v199, %v200
  %v202 = vrot.slane %v201, 2
  %v203 = vadd.f32 %v201, %v202
  %v204 = vrot.slane %v203, 1
  %v205 = vadd.f32 %v203, %v204
  %v206 = vsel %vm48, %v165, 0.0
  %v207 = vsel %vm48, %v166, 0.0
  %v208 = vadd.f32 %v206, %v207
  %v209 = vsel %vm48, %v167, 0.0
  %v210 = vadd.f32 %v208, %v209
  %v211 = vsel %vm48, %v168, 0.0
  %v212 = vadd.f32 %v210, %v211
  %v213 = vrot.slane %v212, 4
  %v214 = vadd.f32 %v212, %v213
  %v215 = vrot.slane %v214, 2
  %v216 = vadd.f32 %v214, %v215
  %v217 = vrot.slane %v216, 1
  %v218 = vadd.f32 %v216, %v217
  %v219 = vsel %vm48, %v169, 0.0
  %v220 = vsel %vm48, %v170, 0.0
  %v221 = vadd.f32 %v219, %v220
  %v222 = vsel %vm48, %v171, 0.0
  %v223 = vadd.f32 %v221, %v222
  %v224 = vsel %vm48, %v172, 0.0
  %v225 = vadd.f32 %v223, %v224
  %v226 = vrot.slane %v225, 4
  %v227 = vadd.f32 %v225, %v226
  %v228 = vrot.slane %v227, 2
  %v229 = vadd.f32 %v227, %v228
  %v230 = vrot.slane %v229, 1
  %v231 = vadd.f32 %v229, %v230
  %v232 = vsel %vm48, %v173, 0.0
  %v233 = vsel %vm48, %v174, 0.0
  %v234 = vadd.f32 %v232, %v233
  %v235 = vsel %vm48, %v175, 0.0
  %v236 = vadd.f32 %v234, %v235
  %v237 = vsel %vm48, %v176, 0.0
  %v238 = vadd.f32 %v236, %v237
  %v239 = vrot.slane %v238, 4
  %v240 = vadd.f32 %v238, %v239
  %v241 = vrot.slane %v240, 2
  %v242 = vadd.f32 %v240, %v241
  %v243 = vrot.slane %v242, 1
  %v244 = vadd.f32 %v242, %v243
  %v245 = vsel %vm48, %v177, 0.0
  %v246 = vsel %vm48, %v178, 0.0
  %v247 = vadd.f32 %v245, %v246
  %v248 = vsel %vm48, %v179, 0.0
  %v249 = vadd.f32 %v247, %v248
  %v250 = vsel %vm48, %v180, 0.0
  %v251 = vadd.f32 %v249, %v250
  %v252 = vrot.slane %v251, 4
  %v253 = vadd.f32 %v251, %v252
  %v254 = vrot.slane %v253, 2
  %v255 = vadd.f32 %v253, %v254
  %v256 = vrot.slane %v255, 1
  %v257 = vadd.f32 %v255, %v256
  %v258 = vsel %vm48, %v181, 0.0
  %v259 = vsel %vm48, %v182, 0.0
  %v260 = vadd.f32 %v258, %v259
  %v261 = vsel %vm48, %v183, 0.0
  %v262 = vadd.f32 %v260, %v261
  %v263 = vsel %vm48, %v184, 0.0
  %v264 = vadd.f32 %v262, %v263
  %v265 = vrot.slane %v264, 4
  %v266 = vadd.f32 %v264, %v265
  %v267 = vrot.slane %v266, 2
  %v268 = vadd.f32 %v266, %v267
  %v269 = vrot.slane %v268, 1
  %v270 = vadd.f32 %v268, %v269
  %v271 = vsel %vm48, %v185, 0.0
  %v272 = vsel %vm48, %v186, 0.0
  %v273 = vadd.f32 %v271, %v272
  %v274 = vsel %vm48, %v187, 0.0
  %v275 = vadd.f32 %v273, %v274
  %v276 = vsel %vm48, %v188, 0.0
  %v277 = vadd.f32 %v275, %v276
  %v278 = vrot.slane %v277, 4
  %v279 = vadd.f32 %v277, %v278
  %v280 = vrot.slane %v279, 2
  %v281 = vadd.f32 %v279, %v280
  %v282 = vrot.slane %v281, 1
  %v283 = vadd.f32 %v281, %v282
  %v284 = vsel %vm48, %v189, 0.0
  %v285 = vsel %vm48, %v190, 0.0
  %v286 = vadd.f32 %v284, %v285
  %v287 = vsel %vm48, %v191, 0.0
  %v288 = vadd.f32 %v286, %v287
  %v289 = vsel %vm48, %v192, 0.0
  %v290 = vadd.f32 %v288, %v289
  %v291 = vrot.slane %v290, 4
  %v292 = vadd.f32 %v290, %v291
  %v293 = vrot.slane %v292, 2
  %v294 = vadd.f32 %v292, %v293
  %v295 = vrot.slane %v294, 1
  %v296 = vadd.f32 %v294, %v295
  %v297 = vmul.f32 %v205, 0.03125
  %v298 = vmul.f32 %v218, 0.03125
  %v299 = vmul.f32 %v231, 0.03125
  %v300 = vmul.f32 %v244, 0.03125
  %v301 = vmul.f32 %v257, 0.03125
  %v302 = vmul.f32 %v270, 0.03125
  %v303 = vmul.f32 %v283, 0.03125
  %v304 = vmul.f32 %v296, 0.03125
  %vm313 = vcmask 1041409
  %v314 = vsel %vm313, %v154, %v153
  %vm315 = vcmask 1042434
  %v316 = vsel %vm315, %v155, %v314
  %vm317 = vcmask 1043459
  %v318 = vsel %vm317, %v156, %v316
  %vm319 = vcmask 1044484
  %v320 = vsel %vm319, %v157, %v318
  %vm321 = vcmask 1045509
  %v322 = vsel %vm321, %v158, %v320
  %vm323 = vcmask 1046534
  %v324 = vsel %vm323, %v159, %v322
  %vm325 = vcmask 1047559
  %v326 = vsel %vm325, %v160, %v324
  %v336 = vsel %vm313, %v298, %v297
  %v337 = vsel %vm315, %v299, %v336
  %v338 = vsel %vm317, %v300, %v337
  %v339 = vsel %vm319, %v301, %v338
  %v340 = vsel %vm321, %v302, %v339
  %v341 = vsel %vm323, %v303, %v340
  %v342 = vsel %vm325, %v304, %v341
  %344 = vxpose.xlu0.b32.start [1/16] %v326, 128
  %345 = vxpose.xlu0.b32.cont [2/16] %v342, 128
  %346 = vxpose.xlu0.b32.cont [3/16] 0.0, 128
  %347 = vxpose.xlu0.b32.cont [4/16] 0.0, 128
  %348 = vxpose.xlu0.b32.cont [5/16] 0.0, 128
  %349 = vxpose.xlu0.b32.cont [6/16] 0.0, 128
  %350 = vxpose.xlu0.b32.cont [7/16] 0.0, 128
  %351 = vxpose.xlu0.b32.cont [8/16] 0.0, 128
  %352 = vxpose.xlu0.b32.cont [9/16] 0.0, 128
  %353 = vxpose.xlu0.b32.cont [10/16] 0.0, 128
  %354 = vxpose.xlu0.b32.cont [11/16] 0.0, 128
  %355 = vxpose.xlu0.b32.cont [12/16] 0.0, 128
  %356 = vxpose.xlu0.b32.cont [13/16] 0.0, 128
  %357 = vxpose.xlu0.b32.cont [14/16] 0.0, 128
  %358 = vxpose.xlu0.b32.cont [15/16] 0.0, 128
  %359 = vxpose.xlu0.b32.end [16/16] 0.0, 128
  %v360 = vpop.trf.xlu0
  %v361 = vpop.trf.xlu0
  %v362 = vpop.trf.xlu0
  %v363 = vpop.trf.xlu0
  %v364 = vpop.trf.xlu0
  %v365 = vpop.trf.xlu0
  %v366 = vpop.trf.xlu0
  %v367 = vpop.trf.xlu0
  %v368 = vpop.trf.xlu0
  %v369 = vpop.trf.xlu0
  %v370 = vpop.trf.xlu0
  %v371 = vpop.trf.xlu0
  %v372 = vpop.trf.xlu0
  %v373 = vpop.trf.xlu0
  %v374 = vpop.trf.xlu0
  %v375 = vpop.trf.xlu0
  %379 = vrot.lane.b32.xlu0 %v360, 120
  %v380 = vpop.permute.xlu0 %379
  %381 = vrot.lane.b32.xlu0 %v361, 120
  %v382 = vpop.permute.xlu0 %381
  %383 = vrot.lane.b32.xlu0 %v362, 120
  %v384 = vpop.permute.xlu0 %383
  %vm388 = vcmask 64512
  %389 = vst.msk [vmem:[%s4] sm:$0xff] %vm388, %v360
  %390 = vst.msk [vmem:[%s4 + $0x8] sm:$0xff] %vm388, %v361
  %vm391 = vcmask 57344
  %392 = vst.msk [vmem:[%s4 + $0x10] sm:$0x1] %vm391, %v362
  %393 = vst.msk [vmem:[%s4 + $0x18] sm:$0xff] %vm388, %v380
  %394 = vst.msk [vmem:[%s4 + $0x20] sm:$0xff] %vm388, %v382
  %395 = vst.msk [vmem:[%s4 + $0x28] sm:$0x1] %vm391, %v384
  %v396 = vld [vmem:[%s1] sm:$0xff]
  %v397 = vld [vmem:[%s1 + $0x8] sm:$0xff]
  %v398 = vld [vmem:[%s1 + $0x10] sm:$0x1]
  %v399 = vld [vmem:[%s2] sm:$0xff]
  %v400 = vld [vmem:[%s2 + $0x8] sm:$0xff]
  %v401 = vld [vmem:[%s2 + $0x10] sm:$0x1]
  %403 = vset.pattern.permute.xlu0 0
  %404 = vperm.xlu0 %403, %v399
  %v405 = vpop.permute.xlu0 %404
  %408 = vset.pattern.permute.xlu0 0
  %409 = vperm.xlu0 %408, %v400
  %v410 = vpop.permute.xlu0 %409
  %413 = vset.pattern.permute.xlu0 0
  %414 = vperm.xlu0 %413, %v401
  %v415 = vpop.permute.xlu0 %414
  %v418 = vsel %vm48, %v396, 0
  %v421 = vsel %vm48, %v397, 0
  %v424 = vsel %vm48, %v398, 0
  %vm426 = vcmask 1040384
  %v427 = vsel %vm426, %v362, 0
  %429 = vmatpush.msra.mxu0 0.0
  %430 = vmatpush.msra.mxu0 0.0
  %431 = vmatpush.msra.mxu0 0.0
  %432 = vmatpush.msra.mxu0 0.0
  %433 = vmatpush.msra.mxu0 0.0
  %434 = vmatpush.msra.mxu0 0.0
  %435 = vmatpush.msra.mxu0 0.0
  %436 = vmatpush.msra.mxu0 0.0
  %437 = vmatpush.msra.mxu0 0.0
  %438 = vmatpush.msra.mxu0 0.0
  %439 = vmatpush.msra.mxu0 0.0
  %440 = vmatpush.msra.mxu0 0.0
  %441 = vmatpush.msra.mxu0 0.0
  %442 = vmatpush.msra.mxu0 %v427
  %443 = vmatpush.msra.mxu0 %v361
  %444 = vmatpush.msra.mxu0 %v360
  %445 = vmatmul.f32.gmra.mxu0 %v418
  %v446 = vpop.f32.mrf.mxu0
  %v447 = vadd.f32 %v405, %v446
  %448 = vmatmul.f32.gmra.mxu0 %v421
  %v449 = vpop.f32.mrf.mxu0
  %v450 = vadd.f32 %v410, %v449
  %451 = vmatmul.f32.gmra.mxu0 %v424
  %v452 = vpop.f32.mrf.mxu0
  %v453 = vadd.f32 %v415, %v452
  %454 = vdwg.mxu0
  %v455 = vmax.f32 %v447, 0.0
  %v456 = vmax.f32 %v450, 0.0
  %v457 = vmax.f32 %v453, 0.0
  %vm458 = vcmask 130112
  %v459 = vsel %vm458, %v455, -inf
  %v460 = vsel %vm458, %v456, -inf
  %vm461 = vcmask 122944
  %v462 = vsel %vm461, %v457, -inf
  %v463 = vmax.f32 %v459, %v460
  %v464 = vmax.f32 %v463, %v462
  %v465 = vrot.slane %v464, 4
  %v466 = vmax.f32 %v464, %v465
  %v467 = vrot.slane %v466, 2
  %v468 = vmax.f32 %v466, %v467
  %v469 = vrot.slane %v468, 1
  %v470 = vmax.f32 %v468, %v469
  %v474 = vrot.slane %v455, 1
  %v475 = vrot.slane %v455, 2
  %v476 = vrot.slane %v455, 3
  %v477 = vrot.slane %v455, 4
  %v478 = vrot.slane %v455, 5
  %v479 = vrot.slane %v455, 6
  %v480 = vrot.slane %v455, 7
  %v481 = vrot.slane %v456, 1
  %v482 = vrot.slane %v456, 2
  %v483 = vrot.slane %v456, 3
  %v484 = vrot.slane %v456, 4
  %v485 = vrot.slane %v456, 5
  %v486 = vrot.slane %v456, 6
  %v487 = vrot.slane %v456, 7
  %v488 = vsub.f32 %v455, %v470
  %v489 = vsub.f32 %v456, %v470
  %v490 = vsub.f32 %v457, %v470
  %v491 = vperm.slane %v455, 0
  %v492 = vperm.slane %v474, 0
  %v493 = vperm.slane %v475, 0
  %v494 = vperm.slane %v476, 0
  %v495 = vperm.slane %v477, 0
  %v496 = vperm.slane %v478, 0
  %v497 = vperm.slane %v479, 0
  %v498 = vperm.slane %v480, 0
  %v499 = vperm.slane %v456, 0
  %v500 = vperm.slane %v481, 0
  %v501 = vperm.slane %v482, 0
  %v502 = vperm.slane %v483, 0
  %v503 = vperm.slane %v484, 0
  %v504 = vperm.slane %v485, 0
  %v505 = vperm.slane %v486, 0
  %v506 = vperm.slane %v487, 0
  %v507 = vperm.slane %v457, 0
  %528 = vrot.lane.b32.xlu0 %v488, 120
  %v529 = vpop.permute.xlu0 %528
  %530 = vrot.lane.b32.xlu0 %v489, 120
  %v531 = vpop.permute.xlu0 %530
  %532 = vrot.lane.b32.xlu0 %v490, 120
  %v533 = vpop.permute.xlu0 %532
  %v537 = vmul.f32 %v491, %v529
  %v538 = vmul.f32 %v491, %v531
  %v539 = vmul.f32 %v491, %v533
  %v540 = vmul.f32 %v492, %v529
  %v541 = vmul.f32 %v492, %v531
  %v542 = vmul.f32 %v492, %v533
  %v543 = vmul.f32 %v493, %v529
  %v544 = vmul.f32 %v493, %v531
  %v545 = vmul.f32 %v493, %v533
  %v546 = vmul.f32 %v494, %v529
  %v547 = vmul.f32 %v494, %v531
  %v548 = vmul.f32 %v494, %v533
  %v549 = vmul.f32 %v495, %v529
  %v550 = vmul.f32 %v495, %v531
  %v551 = vmul.f32 %v495, %v533
  %v552 = vmul.f32 %v496, %v529
  %v553 = vmul.f32 %v496, %v531
  %v554 = vmul.f32 %v496, %v533
  %v555 = vmul.f32 %v497, %v529
  %v556 = vmul.f32 %v497, %v531
  %v557 = vmul.f32 %v497, %v533
  %v558 = vmul.f32 %v498, %v529
  %v559 = vmul.f32 %v498, %v531
  %v560 = vmul.f32 %v498, %v533
  %v561 = vmul.f32 %v499, %v529
  %v562 = vmul.f32 %v499, %v531
  %v563 = vmul.f32 %v499, %v533
  %v564 = vmul.f32 %v500, %v529
  %v565 = vmul.f32 %v500, %v531
  %v566 = vmul.f32 %v500, %v533
  %v567 = vmul.f32 %v501, %v529
  %v568 = vmul.f32 %v501, %v531
  %v569 = vmul.f32 %v501, %v533
  %v570 = vmul.f32 %v502, %v529
  %v571 = vmul.f32 %v502, %v531
  %v572 = vmul.f32 %v502, %v533
  %v573 = vmul.f32 %v503, %v529
  %v574 = vmul.f32 %v503, %v531
  %v575 = vmul.f32 %v503, %v533
  %v576 = vmul.f32 %v504, %v529
  %v577 = vmul.f32 %v504, %v531
  %v578 = vmul.f32 %v504, %v533
  %v579 = vmul.f32 %v505, %v529
  %v580 = vmul.f32 %v505, %v531
  %v581 = vmul.f32 %v505, %v533
  %v582 = vmul.f32 %v506, %v529
  %v583 = vmul.f32 %v506, %v531
  %v584 = vmul.f32 %v506, %v533
  %v585 = vmul.f32 %v507, %v529
  %v586 = vmul.f32 %v507, %v531
  %v587 = vmul.f32 %v507, %v533
  %v588 = vmul.f32 %v537, 1.442695
  %v589 = vpow.pop %v588
  %v590 = vmul.f32 %v538, 1.442695
  %v591 = vpow.pop %v590
  %v592 = vmul.f32 %v539, 1.442695
  %v593 = vpow.pop %v592
  %v594 = vmul.f32 %v540, 1.442695
  %v595 = vpow.pop %v594
  %v596 = vmul.f32 %v541, 1.442695
  %v597 = vpow.pop %v596
  %v598 = vmul.f32 %v542, 1.442695
  %v599 = vpow.pop %v598
  %v600 = vmul.f32 %v543, 1.442695
  %v601 = vpow.pop %v600
  %v602 = vmul.f32 %v544, 1.442695
  %v603 = vpow.pop %v602
  %v604 = vmul.f32 %v545, 1.442695
  %v605 = vpow.pop %v604
  %v606 = vmul.f32 %v546, 1.442695
  %v607 = vpow.pop %v606
  %v608 = vmul.f32 %v547, 1.442695
  %v609 = vpow.pop %v608
  %v610 = vmul.f32 %v548, 1.442695
  %v611 = vpow.pop %v610
  %v612 = vmul.f32 %v549, 1.442695
  %v613 = vpow.pop %v612
  %v614 = vmul.f32 %v550, 1.442695
  %v615 = vpow.pop %v614
  %v616 = vmul.f32 %v551, 1.442695
  %v617 = vpow.pop %v616
  %v618 = vmul.f32 %v552, 1.442695
  %v619 = vpow.pop %v618
  %v620 = vmul.f32 %v553, 1.442695
  %v621 = vpow.pop %v620
  %v622 = vmul.f32 %v554, 1.442695
  %v623 = vpow.pop %v622
  %v624 = vmul.f32 %v555, 1.442695
  %v625 = vpow.pop %v624
  %v626 = vmul.f32 %v556, 1.442695
  %v627 = vpow.pop %v626
  %v628 = vmul.f32 %v557, 1.442695
  %v629 = vpow.pop %v628
  %v630 = vmul.f32 %v558, 1.442695
  %v631 = vpow.pop %v630
  %v632 = vmul.f32 %v559, 1.442695
  %v633 = vpow.pop %v632
  %v634 = vmul.f32 %v560, 1.442695
  %v635 = vpow.pop %v634
  %v636 = vmul.f32 %v561, 1.442695
  %v637 = vpow.pop %v636
  %v638 = vmul.f32 %v562, 1.442695
  %v639 = vpow.pop %v638
  %v640 = vmul.f32 %v563, 1.442695
  %v641 = vpow.pop %v640
  %v642 = vmul.f32 %v564, 1.442695
  %v643 = vpow.pop %v642
  %v644 = vmul.f32 %v565, 1.442695
  %v645 = vpow.pop %v644
  %v646 = vmul.f32 %v566, 1.442695
  %v647 = vpow.pop %v646
  %v648 = vmul.f32 %v567, 1.442695
  %v649 = vpow.pop %v648
  %v650 = vmul.f32 %v568, 1.442695
  %v651 = vpow.pop %v650
  %v652 = vmul.f32 %v569, 1.442695
  %v653 = vpow.pop %v652
  %v654 = vmul.f32 %v570, 1.442695
  %v655 = vpow.pop %v654
  %v656 = vmul.f32 %v571, 1.442695
  %v657 = vpow.pop %v656
  %v658 = vmul.f32 %v572, 1.442695
  %v659 = vpow.pop %v658
  %v660 = vmul.f32 %v573, 1.442695
  %v661 = vpow.pop %v660
  %v662 = vmul.f32 %v574, 1.442695
  %v663 = vpow.pop %v662
  %v664 = vmul.f32 %v575, 1.442695
  %v665 = vpow.pop %v664
  %v666 = vmul.f32 %v576, 1.442695
  %v667 = vpow.pop %v666
  %v668 = vmul.f32 %v577, 1.442695
  %v669 = vpow.pop %v668
  %v670 = vmul.f32 %v578, 1.442695
  %v671 = vpow.pop %v670
  %v672 = vmul.f32 %v579, 1.442695
  %v673 = vpow.pop %v672
  %v674 = vmul.f32 %v580, 1.442695
  %v675 = vpow.pop %v674
  %v676 = vmul.f32 %v581, 1.442695
  %v677 = vpow.pop %v676
  %v678 = vmul.f32 %v582, 1.442695
  %v679 = vpow.pop %v678
  %v680 = vmul.f32 %v583, 1.442695
  %v681 = vpow.pop %v680
  %v682 = vmul.f32 %v584, 1.442695
  %v683 = vpow.pop %v682
  %v684 = vmul.f32 %v585, 1.442695
  %v685 = vpow.pop %v684
  %v686 = vmul.f32 %v586, 1.442695
  %v687 = vpow.pop %v686
  %v688 = vmul.f32 %v587, 1.442695
  %v689 = vpow.pop %v688
  %v690 = vsel %vm388, %v589, 0.0
  %v691 = vsel %vm388, %v591, 0.0
  %v692 = vadd.f32 %v690, %v691
  %v693 = vsel %vm391, %v593, 0.0
  %v694 = vadd.f32 %v692, %v693
  %v695 = vrot.slane %v694, 4
  %v696 = vadd.f32 %v694, %v695
  %v697 = vrot.slane %v696, 2
  %v698 = vadd.f32 %v696, %v697
  %v699 = vrot.slane %v698, 1
  %v700 = vadd.f32 %v698, %v699
  %v701 = vsel %vm388, %v595, 0.0
  %v702 = vsel %vm388, %v597, 0.0
  %v703 = vadd.f32 %v701, %v702
  %v704 = vsel %vm391, %v599, 0.0
  %v705 = vadd.f32 %v703, %v704
  %v706 = vrot.slane %v705, 4
  %v707 = vadd.f32 %v705, %v706
  %v708 = vrot.slane %v707, 2
  %v709 = vadd.f32 %v707, %v708
  %v710 = vrot.slane %v709, 1
  %v711 = vadd.f32 %v709, %v710
  %v712 = vsel %vm388, %v601, 0.0
  %v713 = vsel %vm388, %v603, 0.0
  %v714 = vadd.f32 %v712, %v713
  %v715 = vsel %vm391, %v605, 0.0
  %v716 = vadd.f32 %v714, %v715
  %v717 = vrot.slane %v716, 4
  %v718 = vadd.f32 %v716, %v717
  %v719 = vrot.slane %v718, 2
  %v720 = vadd.f32 %v718, %v719
  %v721 = vrot.slane %v720, 1
  %v722 = vadd.f32 %v720, %v721
  %v723 = vsel %vm388, %v607, 0.0
  %v724 = vsel %vm388, %v609, 0.0
  %v725 = vadd.f32 %v723, %v724
  %v726 = vsel %vm391, %v611, 0.0
  %v727 = vadd.f32 %v725, %v726
  %v728 = vrot.slane %v727, 4
  %v729 = vadd.f32 %v727, %v728
  %v730 = vrot.slane %v729, 2
  %v731 = vadd.f32 %v729, %v730
  %v732 = vrot.slane %v731, 1
  %v733 = vadd.f32 %v731, %v732
  %v734 = vsel %vm388, %v613, 0.0
  %v735 = vsel %vm388, %v615, 0.0
  %v736 = vadd.f32 %v734, %v735
  %v737 = vsel %vm391, %v617, 0.0
  %v738 = vadd.f32 %v736, %v737
  %v739 = vrot.slane %v738, 4
  %v740 = vadd.f32 %v738, %v739
  %v741 = vrot.slane %v740, 2
  %v742 = vadd.f32 %v740, %v741
  %v743 = vrot.slane %v742, 1
  %v744 = vadd.f32 %v742, %v743
  %v745 = vsel %vm388, %v619, 0.0
  %v746 = vsel %vm388, %v621, 0.0
  %v747 = vadd.f32 %v745, %v746
  %v748 = vsel %vm391, %v623, 0.0
  %v749 = vadd.f32 %v747, %v748
  %v750 = vrot.slane %v749, 4
  %v751 = vadd.f32 %v749, %v750
  %v752 = vrot.slane %v751, 2
  %v753 = vadd.f32 %v751, %v752
  %v754 = vrot.slane %v753, 1
  %v755 = vadd.f32 %v753, %v754
  %v756 = vsel %vm388, %v625, 0.0
  %v757 = vsel %vm388, %v627, 0.0
  %v758 = vadd.f32 %v756, %v757
  %v759 = vsel %vm391, %v629, 0.0
  %v760 = vadd.f32 %v758, %v759
  %v761 = vrot.slane %v760, 4
  %v762 = vadd.f32 %v760, %v761
  %v763 = vrot.slane %v762, 2
  %v764 = vadd.f32 %v762, %v763
  %v765 = vrot.slane %v764, 1
  %v766 = vadd.f32 %v764, %v765
  %v767 = vsel %vm388, %v631, 0.0
  %v768 = vsel %vm388, %v633, 0.0
  %v769 = vadd.f32 %v767, %v768
  %v770 = vsel %vm391, %v635, 0.0
  %v771 = vadd.f32 %v769, %v770
  %v772 = vrot.slane %v771, 4
  %v773 = vadd.f32 %v771, %v772
  %v774 = vrot.slane %v773, 2
  %v775 = vadd.f32 %v773, %v774
  %v776 = vrot.slane %v775, 1
  %v777 = vadd.f32 %v775, %v776
  %v778 = vsel %vm388, %v637, 0.0
  %v779 = vsel %vm388, %v639, 0.0
  %v780 = vadd.f32 %v778, %v779
  %v781 = vsel %vm391, %v641, 0.0
  %v782 = vadd.f32 %v780, %v781
  %v783 = vrot.slane %v782, 4
  %v784 = vadd.f32 %v782, %v783
  %v785 = vrot.slane %v784, 2
  %v786 = vadd.f32 %v784, %v785
  %v787 = vrot.slane %v786, 1
  %v788 = vadd.f32 %v786, %v787
  %v789 = vsel %vm388, %v643, 0.0
  %v790 = vsel %vm388, %v645, 0.0
  %v791 = vadd.f32 %v789, %v790
  %v792 = vsel %vm391, %v647, 0.0
  %v793 = vadd.f32 %v791, %v792
  %v794 = vrot.slane %v793, 4
  %v795 = vadd.f32 %v793, %v794
  %v796 = vrot.slane %v795, 2
  %v797 = vadd.f32 %v795, %v796
  %v798 = vrot.slane %v797, 1
  %v799 = vadd.f32 %v797, %v798
  %v800 = vsel %vm388, %v649, 0.0
  %v801 = vsel %vm388, %v651, 0.0
  %v802 = vadd.f32 %v800, %v801
  %v803 = vsel %vm391, %v653, 0.0
  %v804 = vadd.f32 %v802, %v803
  %v805 = vrot.slane %v804, 4
  %v806 = vadd.f32 %v804, %v805
  %v807 = vrot.slane %v806, 2
  %v808 = vadd.f32 %v806, %v807
  %v809 = vrot.slane %v808, 1
  %v810 = vadd.f32 %v808, %v809
  %v811 = vsel %vm388, %v655, 0.0
  %v812 = vsel %vm388, %v657, 0.0
  %v813 = vadd.f32 %v811, %v812
  %v814 = vsel %vm391, %v659, 0.0
  %v815 = vadd.f32 %v813, %v814
  %v816 = vrot.slane %v815, 4
  %v817 = vadd.f32 %v815, %v816
  %v818 = vrot.slane %v817, 2
  %v819 = vadd.f32 %v817, %v818
  %v820 = vrot.slane %v819, 1
  %v821 = vadd.f32 %v819, %v820
  %v822 = vsel %vm388, %v661, 0.0
  %v823 = vsel %vm388, %v663, 0.0
  %v824 = vadd.f32 %v822, %v823
  %v825 = vsel %vm391, %v665, 0.0
  %v826 = vadd.f32 %v824, %v825
  %v827 = vrot.slane %v826, 4
  %v828 = vadd.f32 %v826, %v827
  %v829 = vrot.slane %v828, 2
  %v830 = vadd.f32 %v828, %v829
  %v831 = vrot.slane %v830, 1
  %v832 = vadd.f32 %v830, %v831
  %v833 = vsel %vm388, %v667, 0.0
  %v834 = vsel %vm388, %v669, 0.0
  %v835 = vadd.f32 %v833, %v834
  %v836 = vsel %vm391, %v671, 0.0
  %v837 = vadd.f32 %v835, %v836
  %v838 = vrot.slane %v837, 4
  %v839 = vadd.f32 %v837, %v838
  %v840 = vrot.slane %v839, 2
  %v841 = vadd.f32 %v839, %v840
  %v842 = vrot.slane %v841, 1
  %v843 = vadd.f32 %v841, %v842
  %v844 = vsel %vm388, %v673, 0.0
  %v845 = vsel %vm388, %v675, 0.0
  %v846 = vadd.f32 %v844, %v845
  %v847 = vsel %vm391, %v677, 0.0
  %v848 = vadd.f32 %v846, %v847
  %v849 = vrot.slane %v848, 4
  %v850 = vadd.f32 %v848, %v849
  %v851 = vrot.slane %v850, 2
  %v852 = vadd.f32 %v850, %v851
  %v853 = vrot.slane %v852, 1
  %v854 = vadd.f32 %v852, %v853
  %v855 = vsel %vm388, %v679, 0.0
  %v856 = vsel %vm388, %v681, 0.0
  %v857 = vadd.f32 %v855, %v856
  %v858 = vsel %vm391, %v683, 0.0
  %v859 = vadd.f32 %v857, %v858
  %v860 = vrot.slane %v859, 4
  %v861 = vadd.f32 %v859, %v860
  %v862 = vrot.slane %v861, 2
  %v863 = vadd.f32 %v861, %v862
  %v864 = vrot.slane %v863, 1
  %v865 = vadd.f32 %v863, %v864
  %v866 = vsel %vm388, %v685, 0.0
  %v867 = vsel %vm388, %v687, 0.0
  %v868 = vadd.f32 %v866, %v867
  %v869 = vsel %vm391, %v689, 0.0
  %v870 = vadd.f32 %v868, %v869
  %v871 = vrot.slane %v870, 4
  %v872 = vadd.f32 %v870, %v871
  %v873 = vrot.slane %v872, 2
  %v874 = vadd.f32 %v872, %v873
  %v875 = vrot.slane %v874, 1
  %v876 = vadd.f32 %v874, %v875
  %v877 = vrcp.pop %v700
  %v878 = vmul.f32 %v700, %v877
  %v879 = vsub.f32 1.0, %v878
  %v880 = vmul.f32 %v877, %v879
  %v881 = vadd.f32 %v877, %v880
  %vm882 = vweird.f32 %v700
  %vm883 = vweird.f32 %v877
  %vm884 = vmor %vm882, %vm883
  %v885 = vsel %vm884, %v877, %v881
  %v886 = vand.u32 2147483647, %v700
  %vm887 = vcmp.eq.f32.partialorder %v886, 8.507059e+37
  %v888 = vand.u32 %v700, 2147483648
  %v889 = vor.u32 1.1754944e-38, %v888
  %v890 = vsel %vm887, %v889, %v885
  %v891 = vmul.f32 %v589, %v890
  %v892 = vmul.f32 %v591, %v890
  %v893 = vmul.f32 %v593, %v890
  %v894 = vrcp.pop %v711
  %v895 = vmul.f32 %v711, %v894
  %v896 = vsub.f32 1.0, %v895
  %v897 = vmul.f32 %v894, %v896
  %v898 = vadd.f32 %v894, %v897
  %vm899 = vweird.f32 %v711
  %vm900 = vweird.f32 %v894
  %vm901 = vmor %vm899, %vm900
  %v902 = vsel %vm901, %v894, %v898
  %v903 = vand.u32 2147483647, %v711
  %vm904 = vcmp.eq.f32.partialorder %v903, 8.507059e+37
  %v905 = vand.u32 %v711, 2147483648
  %v906 = vor.u32 1.1754944e-38, %v905
  %v907 = vsel %vm904, %v906, %v902
  %v908 = vmul.f32 %v595, %v907
  %v909 = vmul.f32 %v597, %v907
  %v910 = vmul.f32 %v599, %v907
  %v911 = vrcp.pop %v722
  %v912 = vmul.f32 %v722, %v911
  %v913 = vsub.f32 1.0, %v912
  %v914 = vmul.f32 %v911, %v913
  %v915 = vadd.f32 %v911, %v914
  %vm916 = vweird.f32 %v722
  %vm917 = vweird.f32 %v911
  %vm918 = vmor %vm916, %vm917
  %v919 = vsel %vm918, %v911, %v915
  %v920 = vand.u32 2147483647, %v722
  %vm921 = vcmp.eq.f32.partialorder %v920, 8.507059e+37
  %v922 = vand.u32 %v722, 2147483648
  %v923 = vor.u32 1.1754944e-38, %v922
  %v924 = vsel %vm921, %v923, %v919
  %v925 = vmul.f32 %v601, %v924
  %v926 = vmul.f32 %v603, %v924
  %v927 = vmul.f32 %v605, %v924
  %v928 = vrcp.pop %v733
  %v929 = vmul.f32 %v733, %v928
  %v930 = vsub.f32 1.0, %v929
  %v931 = vmul.f32 %v928, %v930
  %v932 = vadd.f32 %v928, %v931
  %vm933 = vweird.f32 %v733
  %vm934 = vweird.f32 %v928
  %vm935 = vmor %vm933, %vm934
  %v936 = vsel %vm935, %v928, %v932
  %v937 = vand.u32 2147483647, %v733
  %vm938 = vcmp.eq.f32.partialorder %v937, 8.507059e+37
  %v939 = vand.u32 %v733, 2147483648
  %v940 = vor.u32 1.1754944e-38, %v939
  %v941 = vsel %vm938, %v940, %v936
  %v942 = vmul.f32 %v607, %v941
  %v943 = vmul.f32 %v609, %v941
  %v944 = vmul.f32 %v611, %v941
  %v945 = vrcp.pop %v744
  %v946 = vmul.f32 %v744, %v945
  %v947 = vsub.f32 1.0, %v946
  %v948 = vmul.f32 %v945, %v947
  %v949 = vadd.f32 %v945, %v948
  %vm950 = vweird.f32 %v744
  %vm951 = vweird.f32 %v945
  %vm952 = vmor %vm950, %vm951
  %v953 = vsel %vm952, %v945, %v949
  %v954 = vand.u32 2147483647, %v744
  %vm955 = vcmp.eq.f32.partialorder %v954, 8.507059e+37
  %v956 = vand.u32 %v744, 2147483648
  %v957 = vor.u32 1.1754944e-38, %v956
  %v958 = vsel %vm955, %v957, %v953
  %v959 = vmul.f32 %v613, %v958
  %v960 = vmul.f32 %v615, %v958
  %v961 = vmul.f32 %v617, %v958
  %v962 = vrcp.pop %v755
  %v963 = vmul.f32 %v755, %v962
  %v964 = vsub.f32 1.0, %v963
  %v965 = vmul.f32 %v962, %v964
  %v966 = vadd.f32 %v962, %v965
  %vm967 = vweird.f32 %v755
  %vm968 = vweird.f32 %v962
  %vm969 = vmor %vm967, %vm968
  %v970 = vsel %vm969, %v962, %v966
  %v971 = vand.u32 2147483647, %v755
  %vm972 = vcmp.eq.f32.partialorder %v971, 8.507059e+37
  %v973 = vand.u32 %v755, 2147483648
  %v974 = vor.u32 1.1754944e-38, %v973
  %v975 = vsel %vm972, %v974, %v970
  %v976 = vmul.f32 %v619, %v975
  %v977 = vmul.f32 %v621, %v975
  %v978 = vmul.f32 %v623, %v975
  %v979 = vrcp.pop %v766
  %v980 = vmul.f32 %v766, %v979
  %v981 = vsub.f32 1.0, %v980
  %v982 = vmul.f32 %v979, %v981
  %v983 = vadd.f32 %v979, %v982
  %vm984 = vweird.f32 %v766
  %vm985 = vweird.f32 %v979
  %vm986 = vmor %vm984, %vm985
  %v987 = vsel %vm986, %v979, %v983
  %v988 = vand.u32 2147483647, %v766
  %vm989 = vcmp.eq.f32.partialorder %v988, 8.507059e+37
  %v990 = vand.u32 %v766, 2147483648
  %v991 = vor.u32 1.1754944e-38, %v990
  %v992 = vsel %vm989, %v991, %v987
  %v993 = vmul.f32 %v625, %v992
  %v994 = vmul.f32 %v627, %v992
  %v995 = vmul.f32 %v629, %v992
  %v996 = vrcp.pop %v777
  %v997 = vmul.f32 %v777, %v996
  %v998 = vsub.f32 1.0, %v997
  %v999 = vmul.f32 %v996, %v998
  %v1000 = vadd.f32 %v996, %v999
  %vm1001 = vweird.f32 %v777
  %vm1002 = vweird.f32 %v996
  %vm1003 = vmor %vm1001, %vm1002
  %v1004 = vsel %vm1003, %v996, %v1000
  %v1005 = vand.u32 2147483647, %v777
  %vm1006 = vcmp.eq.f32.partialorder %v1005, 8.507059e+37
  %v1007 = vand.u32 %v777, 2147483648
  %v1008 = vor.u32 1.1754944e-38, %v1007
  %v1009 = vsel %vm1006, %v1008, %v1004
  %v1010 = vmul.f32 %v631, %v1009
  %v1011 = vmul.f32 %v633, %v1009
  %v1012 = vmul.f32 %v635, %v1009
  %v1013 = vrcp.pop %v788
  %v1014 = vmul.f32 %v788, %v1013
  %v1015 = vsub.f32 1.0, %v1014
  %v1016 = vmul.f32 %v1013, %v1015
  %v1017 = vadd.f32 %v1013, %v1016
  %vm1018 = vweird.f32 %v788
  %vm1019 = vweird.f32 %v1013
  %vm1020 = vmor %vm1018, %vm1019
  %v1021 = vsel %vm1020, %v1013, %v1017
  %v1022 = vand.u32 2147483647, %v788
  %vm1023 = vcmp.eq.f32.partialorder %v1022, 8.507059e+37
  %v1024 = vand.u32 %v788, 2147483648
  %v1025 = vor.u32 1.1754944e-38, %v1024
  %v1026 = vsel %vm1023, %v1025, %v1021
  %v1027 = vmul.f32 %v637, %v1026
  %v1028 = vmul.f32 %v639, %v1026
  %v1029 = vmul.f32 %v641, %v1026
  %v1030 = vrcp.pop %v799
  %v1031 = vmul.f32 %v799, %v1030
  %v1032 = vsub.f32 1.0, %v1031
  %v1033 = vmul.f32 %v1030, %v1032
  %v1034 = vadd.f32 %v1030, %v1033
  %vm1035 = vweird.f32 %v799
  %vm1036 = vweird.f32 %v1030
  %vm1037 = vmor %vm1035, %vm1036
  %v1038 = vsel %vm1037, %v1030, %v1034
  %v1039 = vand.u32 2147483647, %v799
  %vm1040 = vcmp.eq.f32.partialorder %v1039, 8.507059e+37
  %v1041 = vand.u32 %v799, 2147483648
  %v1042 = vor.u32 1.1754944e-38, %v1041
  %v1043 = vsel %vm1040, %v1042, %v1038
  %v1044 = vmul.f32 %v643, %v1043
  %v1045 = vmul.f32 %v645, %v1043
  %v1046 = vmul.f32 %v647, %v1043
  %v1047 = vrcp.pop %v810
  %v1048 = vmul.f32 %v810, %v1047
  %v1049 = vsub.f32 1.0, %v1048
  %v1050 = vmul.f32 %v1047, %v1049
  %v1051 = vadd.f32 %v1047, %v1050
  %vm1052 = vweird.f32 %v810
  %vm1053 = vweird.f32 %v1047
  %vm1054 = vmor %vm1052, %vm1053
  %v1055 = vsel %vm1054, %v1047, %v1051
  %v1056 = vand.u32 2147483647, %v810
  %vm1057 = vcmp.eq.f32.partialorder %v1056, 8.507059e+37
  %v1058 = vand.u32 %v810, 2147483648
  %v1059 = vor.u32 1.1754944e-38, %v1058
  %v1060 = vsel %vm1057, %v1059, %v1055
  %v1061 = vmul.f32 %v649, %v1060
  %v1062 = vmul.f32 %v651, %v1060
  %v1063 = vmul.f32 %v653, %v1060
  %v1064 = vrcp.pop %v821
  %v1065 = vmul.f32 %v821, %v1064
  %v1066 = vsub.f32 1.0, %v1065
  %v1067 = vmul.f32 %v1064, %v1066
  %v1068 = vadd.f32 %v1064, %v1067
  %vm1069 = vweird.f32 %v821
  %vm1070 = vweird.f32 %v1064
  %vm1071 = vmor %vm1069, %vm1070
  %v1072 = vsel %vm1071, %v1064, %v1068
  %v1073 = vand.u32 2147483647, %v821
  %vm1074 = vcmp.eq.f32.partialorder %v1073, 8.507059e+37
  %v1075 = vand.u32 %v821, 2147483648
  %v1076 = vor.u32 1.1754944e-38, %v1075
  %v1077 = vsel %vm1074, %v1076, %v1072
  %v1078 = vmul.f32 %v655, %v1077
  %v1079 = vmul.f32 %v657, %v1077
  %v1080 = vmul.f32 %v659, %v1077
  %v1081 = vrcp.pop %v832
  %v1082 = vmul.f32 %v832, %v1081
  %v1083 = vsub.f32 1.0, %v1082
  %v1084 = vmul.f32 %v1081, %v1083
  %v1085 = vadd.f32 %v1081, %v1084
  %vm1086 = vweird.f32 %v832
  %vm1087 = vweird.f32 %v1081
  %vm1088 = vmor %vm1086, %vm1087
  %v1089 = vsel %vm1088, %v1081, %v1085
  %v1090 = vand.u32 2147483647, %v832
  %vm1091 = vcmp.eq.f32.partialorder %v1090, 8.507059e+37
  %v1092 = vand.u32 %v832, 2147483648
  %v1093 = vor.u32 1.1754944e-38, %v1092
  %v1094 = vsel %vm1091, %v1093, %v1089
  %v1095 = vmul.f32 %v661, %v1094
  %v1096 = vmul.f32 %v663, %v1094
  %v1097 = vmul.f32 %v665, %v1094
  %v1098 = vrcp.pop %v843
  %v1099 = vmul.f32 %v843, %v1098
  %v1100 = vsub.f32 1.0, %v1099
  %v1101 = vmul.f32 %v1098, %v1100
  %v1102 = vadd.f32 %v1098, %v1101
  %vm1103 = vweird.f32 %v843
  %vm1104 = vweird.f32 %v1098
  %vm1105 = vmor %vm1103, %vm1104
  %v1106 = vsel %vm1105, %v1098, %v1102
  %v1107 = vand.u32 2147483647, %v843
  %vm1108 = vcmp.eq.f32.partialorder %v1107, 8.507059e+37
  %v1109 = vand.u32 %v843, 2147483648
  %v1110 = vor.u32 1.1754944e-38, %v1109
  %v1111 = vsel %vm1108, %v1110, %v1106
  %v1112 = vmul.f32 %v667, %v1111
  %v1113 = vmul.f32 %v669, %v1111
  %v1114 = vmul.f32 %v671, %v1111
  %v1115 = vrcp.pop %v854
  %v1116 = vmul.f32 %v854, %v1115
  %v1117 = vsub.f32 1.0, %v1116
  %v1118 = vmul.f32 %v1115, %v1117
  %v1119 = vadd.f32 %v1115, %v1118
  %vm1120 = vweird.f32 %v854
  %vm1121 = vweird.f32 %v1115
  %vm1122 = vmor %vm1120, %vm1121
  %v1123 = vsel %vm1122, %v1115, %v1119
  %v1124 = vand.u32 2147483647, %v854
  %vm1125 = vcmp.eq.f32.partialorder %v1124, 8.507059e+37
  %v1126 = vand.u32 %v854, 2147483648
  %v1127 = vor.u32 1.1754944e-38, %v1126
  %v1128 = vsel %vm1125, %v1127, %v1123
  %v1129 = vmul.f32 %v673, %v1128
  %v1130 = vmul.f32 %v675, %v1128
  %v1131 = vmul.f32 %v677, %v1128
  %v1132 = vrcp.pop %v865
  %v1133 = vmul.f32 %v865, %v1132
  %v1134 = vsub.f32 1.0, %v1133
  %v1135 = vmul.f32 %v1132, %v1134
  %v1136 = vadd.f32 %v1132, %v1135
  %vm1137 = vweird.f32 %v865
  %vm1138 = vweird.f32 %v1132
  %vm1139 = vmor %vm1137, %vm1138
  %v1140 = vsel %vm1139, %v1132, %v1136
  %v1141 = vand.u32 2147483647, %v865
  %vm1142 = vcmp.eq.f32.partialorder %v1141, 8.507059e+37
  %v1143 = vand.u32 %v865, 2147483648
  %v1144 = vor.u32 1.1754944e-38, %v1143
  %v1145 = vsel %vm1142, %v1144, %v1140
  %v1146 = vmul.f32 %v679, %v1145
  %v1147 = vmul.f32 %v681, %v1145
  %v1148 = vmul.f32 %v683, %v1145
  %v1149 = vrcp.pop %v876
  %v1150 = vmul.f32 %v876, %v1149
  %v1151 = vsub.f32 1.0, %v1150
  %v1152 = vmul.f32 %v1149, %v1151
  %v1153 = vadd.f32 %v1149, %v1152
  %vm1154 = vweird.f32 %v876
  %vm1155 = vweird.f32 %v1149
  %vm1156 = vmor %vm1154, %vm1155
  %v1157 = vsel %vm1156, %v1149, %v1153
  %v1158 = vand.u32 2147483647, %v876
  %vm1159 = vcmp.eq.f32.partialorder %v1158, 8.507059e+37
  %v1160 = vand.u32 %v876, 2147483648
  %v1161 = vor.u32 1.1754944e-38, %v1160
  %v1162 = vsel %vm1159, %v1161, %v1157
  %v1163 = vmul.f32 %v685, %v1162
  %v1164 = vmul.f32 %v687, %v1162
  %v1165 = vmul.f32 %v689, %v1162
  %1166 = vst.msk [vmem:[%s3] sm:$0xff] %vm388, %v891
  %1167 = vst.msk [vmem:[%s3 + $0x8] sm:$0xff] %vm388, %v892
  %1168 = vst.msk [vmem:[%s3 + $0x10] sm:$0x1] %vm391, %v893
  %1169 = vst.msk [vmem:[%s3 + $0x18] sm:$0xff] %vm388, %v908
  %1170 = vst.msk [vmem:[%s3 + $0x20] sm:$0xff] %vm388, %v909
  %1171 = vst.msk [vmem:[%s3 + $0x28] sm:$0x1] %vm391, %v910
  %1172 = vst.msk [vmem:[%s3 + $0x30] sm:$0xff] %vm388, %v925
  %1173 = vst.msk [vmem:[%s3 + $0x38] sm:$0xff] %vm388, %v926
  %1174 = vst.msk [vmem:[%s3 + $0x40] sm:$0x1] %vm391, %v927
  %1175 = vst.msk [vmem:[%s3 + $0x48] sm:$0xff] %vm388, %v942
  %1176 = vst.msk [vmem:[%s3 + $0x50] sm:$0xff] %vm388, %v943
  %1177 = vst.msk [vmem:[%s3 + $0x58] sm:$0x1] %vm391, %v944
  %1178 = vst.msk [vmem:[%s3 + $0x60] sm:$0xff] %vm388, %v959
  %1179 = vst.msk [vmem:[%s3 + $0x68] sm:$0xff] %vm388, %v960
  %1180 = vst.msk [vmem:[%s3 + $0x70] sm:$0x1] %vm391, %v961
  %1181 = vst.msk [vmem:[%s3 + $0x78] sm:$0xff] %vm388, %v976
  %1182 = vst.msk [vmem:[%s3 + $0x80] sm:$0xff] %vm388, %v977
  %1183 = vst.msk [vmem:[%s3 + $0x88] sm:$0x1] %vm391, %v978
  %1184 = vst.msk [vmem:[%s3 + $0x90] sm:$0xff] %vm388, %v993
  %1185 = vst.msk [vmem:[%s3 + $0x98] sm:$0xff] %vm388, %v994
  %1186 = vst.msk [vmem:[%s3 + $0xa0] sm:$0x1] %vm391, %v995
  %1187 = vst.msk [vmem:[%s3 + $0xa8] sm:$0xff] %vm388, %v1010
  %1188 = vst.msk [vmem:[%s3 + $0xb0] sm:$0xff] %vm388, %v1011
  %1189 = vst.msk [vmem:[%s3 + $0xb8] sm:$0x1] %vm391, %v1012
  %1190 = vst.msk [vmem:[%s3 + $0xc0] sm:$0xff] %vm388, %v1027
  %1191 = vst.msk [vmem:[%s3 + $0xc8] sm:$0xff] %vm388, %v1028
  %1192 = vst.msk [vmem:[%s3 + $0xd0] sm:$0x1] %vm391, %v1029
  %1193 = vst.msk [vmem:[%s3 + $0xd8] sm:$0xff] %vm388, %v1044
  %1194 = vst.msk [vmem:[%s3 + $0xe0] sm:$0xff] %vm388, %v1045
  %1195 = vst.msk [vmem:[%s3 + $0xe8] sm:$0x1] %vm391, %v1046
  %1196 = vst.msk [vmem:[%s3 + $0xf0] sm:$0xff] %vm388, %v1061
  %1197 = vst.msk [vmem:[%s3 + $0xf8] sm:$0xff] %vm388, %v1062
  %1198 = vst.msk [vmem:[%s3 + $0x100] sm:$0x1] %vm391, %v1063
  %1199 = vst.msk [vmem:[%s3 + $0x108] sm:$0xff] %vm388, %v1078
  %1200 = vst.msk [vmem:[%s3 + $0x110] sm:$0xff] %vm388, %v1079
  %1201 = vst.msk [vmem:[%s3 + $0x118] sm:$0x1] %vm391, %v1080
  %1202 = vst.msk [vmem:[%s3 + $0x120] sm:$0xff] %vm388, %v1095
  %1203 = vst.msk [vmem:[%s3 + $0x128] sm:$0xff] %vm388, %v1096
  %1204 = vst.msk [vmem:[%s3 + $0x130] sm:$0x1] %vm391, %v1097
  %1205 = vst.msk [vmem:[%s3 + $0x138] sm:$0xff] %vm388, %v1112
  %1206 = vst.msk [vmem:[%s3 + $0x140] sm:$0xff] %vm388, %v1113
  %1207 = vst.msk [vmem:[%s3 + $0x148] sm:$0x1] %vm391, %v1114
  %1208 = vst.msk [vmem:[%s3 + $0x150] sm:$0xff] %vm388, %v1129
  %1209 = vst.msk [vmem:[%s3 + $0x158] sm:$0xff] %vm388, %v1130
  %1210 = vst.msk [vmem:[%s3 + $0x160] sm:$0x1] %vm391, %v1131
  %1211 = vst.msk [vmem:[%s3 + $0x168] sm:$0xff] %vm388, %v1146
  %1212 = vst.msk [vmem:[%s3 + $0x170] sm:$0xff] %vm388, %v1147
  %1213 = vst.msk [vmem:[%s3 + $0x178] sm:$0x1] %vm391, %v1148
  %1214 = vst.msk [vmem:[%s3 + $0x180] sm:$0xff] %vm388, %v1163
  %1215 = vst.msk [vmem:[%s3 + $0x188] sm:$0xff] %vm388, %v1164
  %1216 = vst.msk [vmem:[%s3 + $0x190] sm:$0x1] %vm391, %v1165
  // Predicated region
  $region14: #{tpu_custom_call.1} parent=0 // pred_check
    _
  $region15: #{tpu_custom_call.1} parent=0 // pred_check_branch
    %1218 = sbr.rel (0) target = $region17
  $region16: #{tpu_custom_call.1} parent=0 // pred_region
    _
  $region17: #{tpu_custom_call.1} parent=0 // pred_fallthru
    _
  // Predicated region
  $region18: #{tpu_custom_call.1} parent=0 // pred_check
    _
  $region19: #{tpu_custom_call.1} parent=0 // pred_check_branch
    %1220 = sbr.rel (0) target = $region21
  $region20: #{tpu_custom_call.1} parent=0 // pred_region
    _
  $region21: #{tpu_custom_call.1} parent=0 // pred_fallthru
    _
  // Predicated region
  $region22: #{tpu_custom_call.1} parent=0 // pred_check
    _
  $region23: #{tpu_custom_call.1} parent=0 // pred_check_branch
    %1222 = sbr.rel (0) target = $region25
  $region24: #{tpu_custom_call.1} parent=0 // pred_region
    _
  $region25: #{tpu_custom_call.1} parent=0 // pred_fallthru
    _
  // Predicated region
  $region26: #{tpu_custom_call.1} parent=0 // pred_check
    _
  $region27: #{tpu_custom_call.1} parent=0 // pred_check_branch
    %1224 = sbr.rel (0) target = $region29
  $region28: #{tpu_custom_call.1} parent=0 // pred_region
    _
  $region29: #{tpu_custom_call.1} parent=0 // pred_fallthru
    _

</llo_original>
